<compile_context>
chip_gen: v7x
topology: tpu7x:2x2x1
jax: 0.10.0
libtpu: 0.0.40
codegen_flags: <defaults>
</compile_context>

<pallas_src>
from functools import partial
from typing import Dict, Optional, Sequence

import jax
import jax.numpy as jnp
from jax.experimental import pallas as pl
from jax.experimental.pallas import tpu as pltpu


# ----------------------------------------------------------------------------
# Pallas kernel: whole-batch 3x3 "same" conv + bias + ReLU as one MXU matmul.
# ----------------------------------------------------------------------------
def _conv_engine_kernel(x2d_ref, w_ref, b_ref, o_ref, *, B, H, KH):
    # x2d_ref: (B*(H+KH-1), (W+KW-1)*Cin) f32  zero-padded NHWC activations,
    #          flattened 2D: rows = (b, padded_h), cols = (padded_w, cin).
    # w_ref:   (KH*(W+KW-1)*Cin, W*Cout) bf16  Toeplitz-lowered conv weight.
    # b_ref:   (1, W*Cout) f32                 bias tiled along W.
    # o_ref:   (B*H, W*Cout) f32               lane-dense output.
    Hp = H + KH - 1
    parts = []
    for b in range(B):                      # static loop, B <= 4 per profile
        base = b * Hp
        # Row-im2col: KH vertically shifted row blocks, concatenated along lanes.
        rows = [x2d_ref[base + kh: base + kh + H, :] for kh in range(KH)]
        parts.append(jnp.concatenate(rows, axis=1))       # (H, KH*(W+KW-1)*Cin)
    lhs = jnp.concatenate(parts, axis=0)                  # (B*H, K)
    acc = jnp.dot(lhs.astype(jnp.bfloat16), w_ref[...],
                  preferred_element_type=jnp.float32)     # (B*H, W*Cout)
    acc = acc + b_ref[...]                                # bias broadcast over rows
    o_ref[...] = jnp.maximum(acc, 0.0)                    # full-width (unmasked) stores


def conv3x3_bias_relu_pallas(x_nhwc, weight, bias):
    """x_nhwc: (B,H,W,Cin) f32; weight: (KH,KW,Cin,Cout) f32; bias: (1,Cout) f32.

    Returns y_nhwc: (B,H,W,Cout) f32 -- stride-1 "same" conv + bias + ReLU.
    """
    B, H, W, Cin = x_nhwc.shape
    KH, KW, _, Cout = weight.shape
    ph, pw = KH // 2, KW // 2
    Hp, Wp = H + KH - 1, W + KW - 1

    # Pad + flatten activations to lane-dense 2D; fuses with the NCHW->NHWC
    # transpose into one tiny XLA layout pass (no extra HBM round trip).
    x_pad = jnp.pad(x_nhwc, ((0, 0), (ph, ph), (pw, pw), (0, 0)))
    x2d = x_pad.reshape(B * Hp, Wp * Cin)

    # Toeplitz-lowered weight: bigw[(kh, wp, ci), (w, co)] = weight[kh, wp-w, ci, co]
    # for 0 <= wp-w < KW, else 0.  Built once per shape; (K, W*Cout) is tiny.
    kh = jnp.arange(KH)[:, None, None, None, None]
    wp = jnp.arange(Wp)[None, :, None, None, None]
    ci = jnp.arange(Cin)[None, None, :, None, None]
    w_ = jnp.arange(W)[None, None, None, :, None]
    co = jnp.arange(Cout)[None, None, None, None, :]
    kw = wp - w_
    valid = (kw >= 0) & (kw < KW)
    bigw = jnp.where(valid, weight[kh, jnp.clip(kw, 0, KW - 1), ci, co], 0.0)
    bigw = bigw.reshape(KH * Wp * Cin, W * Cout).astype(jnp.bfloat16)

    bias_wide = jnp.tile(bias.astype(jnp.float32), (1, W))      # (1, W*Cout)

    kernel = partial(_conv_engine_kernel, B=B, H=H, KH=KH)
    y2d = pl.pallas_call(
        kernel,
        out_shape=jax.ShapeDtypeStruct((B * H, W * Cout), jnp.float32),
        in_specs=[
            pl.BlockSpec(memory_space=pltpu.MemorySpace.VMEM),
            pl.BlockSpec(memory_space=pltpu.MemorySpace.VMEM),
            pl.BlockSpec(memory_space=pltpu.MemorySpace.VMEM),
        ],
        out_specs=pl.BlockSpec(memory_space=pltpu.MemorySpace.VMEM),
    )(x2d, bigw, bias_wide)

    return y2d.reshape(B, H, W, Cout)


# ----------------------------------------------------------------------------
# TRTWrapper equivalent: dict-in / dict-out engine runner.
# ----------------------------------------------------------------------------
class TRTWrapperPallas:
    """Mirror of TRTWrapper.forward semantics with a synthetic Pallas 'engine'.

    - input/output bindings are name-keyed dicts
    - input shapes are validated against a (min, opt, max) profile
    - int64 inputs are downcast to int32 (torch.long -> int)
    - outputs are always float32, shaped per the context binding shape
    """

    def __init__(self,
                 input_profiles: Dict[str, tuple],
                 output_names: Optional[Sequence[str]] = None,
                 cin: int = 4, cout: int = 8, seed: int = 0):
        # TODO(synk): engine deserialization / binding-index lookup / CUDA stream
        # execution have no Pallas equivalent; the engine graph is a fixed
        # synthetic conv3x3 + bias + relu.
        self._input_names = list(input_profiles.keys())
        self._profiles = input_profiles  # name -> (min_shape, opt_shape, max_shape)
        self._output_names = list(output_names) if output_names is not None else ["output"]

        # Deterministic parameter init (stands in for the serialized engine weights).
        kw_key, kb_key = jax.random.split(jax.random.PRNGKey(seed))
        self.weight = jax.random.normal(kw_key, (3, 3, cin, cout), jnp.float32) * 0.1
        self.bias = jax.random.normal(kb_key, (1, cout), jnp.float32) * 0.1
        self.cin, self.cout = cin, cout

    def forward(self, inputs: Dict[str, jnp.ndarray]) -> Dict[str, jnp.ndarray]:
        assert self._input_names is not None
        assert self._output_names is not None

        bound = {}
        for input_name, input_tensor in inputs.items():
            profile = self._profiles[input_name]
            assert input_tensor.ndim == len(profile[0]), \
                "Input dim is different from engine profile."
            for s_min, s_input, s_max in zip(profile[0], input_tensor.shape, profile[2]):
                assert s_min <= s_input <= s_max, (
                    "Input shape should be between "
                    f"{profile[0]} and {profile[2]}"
                    f" but get {tuple(input_tensor.shape)}.")
            if input_tensor.dtype == jnp.int64:      # torch.long -> torch.int
                input_tensor = input_tensor.astype(jnp.int32)
            bound[input_name] = input_tensor

        # --- synthetic engine execution (the Pallas hot path) ----------------
        x_nchw = bound[self._input_names[0]].astype(jnp.float32)   # (B, Cin, H, W)
        B, Cin, H, W = x_nchw.shape
        assert Cin == self.cin
        x_nhwc = jnp.transpose(x_nchw, (0, 2, 3, 1))                # NCHW -> NHWC
        y_nhwc = conv3x3_bias_relu_pallas(x_nhwc, self.weight, self.bias)
        y_nchw = jnp.transpose(y_nhwc, (0, 3, 1, 2)).astype(jnp.float32)

        outputs = {}
        for output_name in self._output_names:
            outputs[output_name] = y_nchw   # dtype float32, shape from context
        return outputs

    __call__ = forward


# ----------------------------------------------------------------------------
# Pure-JAX reference for a sanity check.
# ----------------------------------------------------------------------------
def _conv_ref(x_nchw, w, b):
    x = jnp.transpose(x_nchw, (0, 2, 3, 1)).astype(jnp.float32)
    y = jax.lax.conv_general_dilated(
        x, w, window_strides=(1, 1), padding="SAME",
        dimension_numbers=("NHWC", "HWIO", "NHWC"))
    y = jnp.maximum(y + b[0], 0.0)
    return jnp.transpose(y, (0, 3, 1, 2))


if __name__ == "__main__":
    B, Cin, H, W = 2, 4, 16, 16
    key = jax.random.PRNGKey(0)
    x = jax.random.normal(key, (B, Cin, H, W), jnp.float32)

    profiles = {"input": ((1, Cin, 8, 8), (B, Cin, H, W), (4, Cin, 32, 32))}
    wrapper = TRTWrapperPallas(profiles, output_names=["output"], cin=Cin, cout=8)

    outputs = wrapper({"input": x})
    y = jax.block_until_ready(outputs["output"])

    y_ref = _conv_ref(x, wrapper.weight, wrapper.bias)
    assert y.shape == (B, 8, H, W)
    assert y.dtype == jnp.float32
    # bf16 matmul inputs with f32 accumulation: loosened tolerance vs f32 reference.
    assert jnp.allclose(y, y_ref, atol=2e-2, rtol=2e-2)

    print("KERNEL_OK")
</pallas_src>

<mosaic_0001>
module attributes {stable_mosaic.version = 11 : i64} {
  func.func @_conv_engine_kernel(%arg0: memref<36x72xf32, #tpu.memory_space<vmem>>, %arg1: memref<216x128xbf16, #tpu.memory_space<vmem>>, %arg2: memref<1x128xf32, #tpu.memory_space<vmem>>, %arg3: memref<32x128xf32, #tpu.memory_space<vmem>>) attributes {dimension_semantics = [], scalar_prefetch = 0 : i64, scratch_operands = 0 : i64, tpu.core_type = #tpu.core_type<tc>} {
    %c0 = arith.constant 0 : index
    %c0_0 = arith.constant 0 : index
    %0 = vector.load %arg0[%c0, %c0_0] : memref<36x72xf32, #tpu.memory_space<vmem>>, vector<16x72xf32>
    %c1 = arith.constant 1 : index
    %c0_1 = arith.constant 0 : index
    %1 = vector.load %arg0[%c1, %c0_1] : memref<36x72xf32, #tpu.memory_space<vmem>>, vector<16x72xf32>
    %c2 = arith.constant 2 : index
    %c0_2 = arith.constant 0 : index
    %2 = vector.load %arg0[%c2, %c0_2] : memref<36x72xf32, #tpu.memory_space<vmem>>, vector<16x72xf32>
    %3 = tpu.concatenate %0, %1, %2 in 1 : vector<16x72xf32>, vector<16x72xf32>, vector<16x72xf32> -> vector<16x216xf32>
    %c18 = arith.constant 18 : index
    %c0_3 = arith.constant 0 : index
    %4 = vector.load %arg0[%c18, %c0_3] : memref<36x72xf32, #tpu.memory_space<vmem>>, vector<16x72xf32>
    %c19 = arith.constant 19 : index
    %c0_4 = arith.constant 0 : index
    %5 = vector.load %arg0[%c19, %c0_4] : memref<36x72xf32, #tpu.memory_space<vmem>>, vector<16x72xf32>
    %c20 = arith.constant 20 : index
    %c0_5 = arith.constant 0 : index
    %6 = vector.load %arg0[%c20, %c0_5] : memref<36x72xf32, #tpu.memory_space<vmem>>, vector<16x72xf32>
    %7 = tpu.concatenate %4, %5, %6 in 1 : vector<16x72xf32>, vector<16x72xf32>, vector<16x72xf32> -> vector<16x216xf32>
    %8 = tpu.concatenate %3, %7 in 0 : vector<16x216xf32>, vector<16x216xf32> -> vector<32x216xf32>
    %9 = arith.truncf %8 : vector<32x216xf32> to vector<32x216xbf16>
    %c0_6 = arith.constant 0 : index
    %c0_7 = arith.constant 0 : index
    %10 = vector.load %arg1[%c0_6, %c0_7] : memref<216x128xbf16, #tpu.memory_space<vmem>>, vector<216x128xbf16>
    %cst = arith.constant dense<0.000000e+00> : vector<32x128xf32>
    %11 = tpu.matmul %9, %10, %cst {dimension_numbers = #tpu.dot_dimension_numbers<[1], [0], [0], [1], [0, 0, 1, 1], [], []>} : vector<32x216xbf16>, vector<216x128xbf16>, vector<32x128xf32> -> vector<32x128xf32>
    %c0_8 = arith.constant 0 : index
    %c0_9 = arith.constant 0 : index
    %12 = vector.load %arg2[%c0_8, %c0_9] : memref<1x128xf32, #tpu.memory_space<vmem>>, vector<1x128xf32>
    %13 = vector.broadcast %12 : vector<1x128xf32> to vector<32x128xf32>
    %14 = arith.addf %11, %13 : vector<32x128xf32>
    %cst_10 = arith.constant 0.000000e+00 : f32
    %15 = vector.broadcast %cst_10 : f32 to vector<32x128xf32>
    %16 = arith.maximumf %14, %15 : vector<32x128xf32>
    %c0_11 = arith.constant 0 : index
    %c0_12 = arith.constant 0 : index
    %17 = vector.load %arg3[%c0_11, %c0_12] : memref<32x128xf32, #tpu.memory_space<vmem>>, vector<32x128xf32>
    tpu.vector_store %arg3[%c0_11, %c0_12], %16 {strides = array<i32>} : memref<32x128xf32, #tpu.memory_space<vmem>>, vector<32x128xf32>,
    return
  }
}

</mosaic_0001>

<llo_original>
// kernel: tpu_custom_call.1
$region0: #{tpu_custom_call.1}
  #allocation0 [shape = 'u32[]', space=smem, size = 0x4, offset = 0x4, fixed_abs, tag = 'smem constant byte address 0x4 - core index']
  #allocation1 [shape = 'u32[144,128]{1,0:T(1,128)}', space=vmem, size = 0x12000, scoped, tag = 'internal scratch']
  %s0 = inlined_call_operand.hbm [shape: f32[36,72], index: 0, kind: input, shape index: {}]
  %s1 = inlined_call_operand.hbm [shape: bf16[216,128], index: 1, kind: input, shape index: {}]
  %s2 = inlined_call_operand.vmem [shape: f32[1,128], index: 2, kind: input, shape index: {}]
  %s3 = inlined_call_operand.hbm [shape: f32[32,128], index: 3, kind: output, shape index: {}]
  %s4 = sld [smem:[#allocation0]]
  $region30: #{tpu_custom_call.1} parent=0
    _
  %s6 = ssub.s32 1, %s4
  %s7 = scalar_select 0, %s6, %s4
  $region1: #{tpu_custom_call.1} parent=0
    #allocation2 [shape = 'u8[20480]{0}', space=vmem, size = 0x5000, scoped, tag = 'input window, operand 0, single buffered']
    #allocation3 [shape = 's32[1]{0}', space=sflag, size = 0x4, scoped, tag = 'scoped memory for tpu_custom_call.1']
    #allocation4 [shape = 's32[1]{0}', space=sflag, size = 0x4, scoped, tag = 'scoped memory for tpu_custom_call.1']
    #allocation5 [shape = 'u8[55296]{0}', space=vmem, size = 0xd800, scoped, tag = 'input window, operand 1, single buffered']
    #allocation6 [shape = 's32[1]{0}', space=sflag, size = 0x4, scoped, tag = 'scoped memory for tpu_custom_call.1']
    #allocation7 [shape = 'u8[16384]{0}', space=vmem, size = 0x4000, scoped, tag = 'output window, operand 0, single buffered']
    %8 = vsyncpa [#allocation3], 0
    %9 = vsyncpa [#allocation6], 0
    %10 = vsyncpa [#allocation4], 0
    // Predicated region
    $region2: #{tpu_custom_call.1} parent=1 // pred_check
      _
    $region3: #{tpu_custom_call.1} parent=1 // pred_check_branch
      %12 = sbr.rel (0) target = $region5
    $region4: #{tpu_custom_call.1} parent=1 // pred_region
      %s14 = ssub.s32 640, 640
      %15 = vsyncadd [#allocation3], %s14
      %s16 = sshll.u32 [#allocation2], 4
      %s17 = int_to_ptr.vmem [resolvable:$true] %s16
      %22 = dma.hbm_to_vmem [thread:$0]  %s0, 640, %s17, [#allocation3], 128, 128, 8
    $region5: #{tpu_custom_call.1} parent=1 // pred_fallthru
      _
    // Predicated region
    $region6: #{tpu_custom_call.1} parent=1 // pred_check
      _
    $region7: #{tpu_custom_call.1} parent=1 // pred_check_branch
      %24 = sbr.rel (0) target = $region9
    $region8: #{tpu_custom_call.1} parent=1 // pred_region
      %s26 = ssub.s32 1728, 1728
      %27 = vsyncadd [#allocation6], %s26
      %s28 = sshll.u32 [#allocation5], 4
      %s29 = int_to_ptr.vmem [resolvable:$true] %s28
      %34 = dma.hbm_to_vmem [thread:$0]  %s1, 1728, %s29, [#allocation6], 64, 64, 4
    $region9: #{tpu_custom_call.1} parent=1 // pred_fallthru
      _
    // Predicated region
    $region10: #{tpu_custom_call.1} parent=1 // pred_check
      _
    $region11: #{tpu_custom_call.1} parent=1 // pred_check_branch
      %36 = sbr.rel (0) target = $region13
    $region12: #{tpu_custom_call.1} parent=1 // pred_region
      _
    $region13: #{tpu_custom_call.1} parent=1 // pred_fallthru
      _
    // Predicated region
    $region14: #{tpu_custom_call.1} parent=1 // pred_check
      _
    $region15: #{tpu_custom_call.1} parent=1 // pred_check_branch
      %38 = sbr.rel (0) target = $region17
    $region16: #{tpu_custom_call.1} parent=1 // pred_region
      %39 = dma.done [#allocation3], 640
    $region17: #{tpu_custom_call.1} parent=1 // pred_fallthru
      _
    // Predicated region
    $region18: #{tpu_custom_call.1} parent=1 // pred_check
      _
    $region19: #{tpu_custom_call.1} parent=1 // pred_check_branch
      %41 = sbr.rel (0) target = $region21
    $region20: #{tpu_custom_call.1} parent=1 // pred_region
      %42 = dma.done [#allocation6], 1728
    $region21: #{tpu_custom_call.1} parent=1 // pred_fallthru
      _
    %v44 = vld [vmem:[#allocation2] sm:$0xff]
    %v45 = vld [vmem:[#allocation2 + $0x8] sm:$0xff]
    %v46 = vld [vmem:[#allocation2 + $0x1] sm:$0xff]
    %v47 = vld [vmem:[#allocation2 + $0x9] sm:$0xff]
    %v48 = vld [vmem:[#allocation2 + $0x2] sm:$0xff]
    %v49 = vld [vmem:[#allocation2 + $0xa] sm:$0xff]
    %52 = vrot.lane.b32.xlu0 %v46, 72
    %v53 = vpop.permute.xlu0 %52
    %54 = vrot.lane.b32.xlu0 %v47, 72
    %v55 = vpop.permute.xlu0 %54
    %60 = vrot.lane.b32.xlu0 %v48, 16
    %v61 = vpop.permute.xlu0 %60
    %62 = vrot.lane.b32.xlu0 %v49, 16
    %v63 = vpop.permute.xlu0 %62
    %vm66 = vcmask 588800
    %v67 = vsel %vm66, %v44, %v53
    %v68 = vsel %vm66, %v45, %v55
    %vm69 = vcmask 130048
    %v70 = vsel %vm69, %v53, %v61
    %v71 = vsel %vm69, %v55, %v63
    %v72 = vld [vmem:[#allocation2 + $0x12] sm:$0xff]
    %v73 = vld [vmem:[#allocation2 + $0x1a] sm:$0xff]
    %v74 = vld [vmem:[#allocation2 + $0x13] sm:$0xff]
    %v75 = vld [vmem:[#allocation2 + $0x1b] sm:$0xff]
    %v76 = vld [vmem:[#allocation2 + $0x14] sm:$0xff]
    %v77 = vld [vmem:[#allocation2 + $0x1c] sm:$0xff]
    %80 = vrot.lane.b32.xlu0 %v74, 72
    %v81 = vpop.permute.xlu0 %80
    %82 = vrot.lane.b32.xlu0 %v75, 72
    %v83 = vpop.permute.xlu0 %82
    %88 = vrot.lane.b32.xlu0 %v76, 16
    %v89 = vpop.permute.xlu0 %88
    %90 = vrot.lane.b32.xlu0 %v77, 16
    %v91 = vpop.permute.xlu0 %90
    %v94 = vsel %vm66, %v72, %v81
    %v95 = vsel %vm66, %v73, %v83
    %v96 = vsel %vm69, %v81, %v89
    %v97 = vsel %vm69, %v83, %v91
    %v98 = vpack.c.bf16 %v68, %v67
    %v99 = vpack.c.bf16 %v71, %v70
    %v100 = vpack.c.bf16 %v95, %v94
    %v101 = vpack.c.bf16 %v97, %v96
    %v102 = vld [vmem:[#allocation5] sm:$0xf]
    %v103 = vld [vmem:[#allocation5 + $0x4] sm:$0xf]
    %v104 = vld [vmem:[#allocation5 + $0x8] sm:$0xf]
    %v105 = vld [vmem:[#allocation5 + $0xc] sm:$0xf]
    %v106 = vld [vmem:[#allocation5 + $0x10] sm:$0xf]
    %v107 = vld [vmem:[#allocation5 + $0x14] sm:$0xf]
    %v108 = vld [vmem:[#allocation5 + $0x18] sm:$0xf]
    %v109 = vld [vmem:[#allocation5 + $0x1c] sm:$0xf]
    %v110 = vld [vmem:[#allocation5 + $0x20] sm:$0xf]
    %v111 = vld [vmem:[#allocation5 + $0x24] sm:$0xf]
    %v112 = vld [vmem:[#allocation5 + $0x28] sm:$0xf]
    %v113 = vld [vmem:[#allocation5 + $0x2c] sm:$0xf]
    %v114 = vld [vmem:[#allocation5 + $0x30] sm:$0xf]
    %v115 = vld [vmem:[#allocation5 + $0x34] sm:$0xf]
    %v116 = vld [vmem:[#allocation5 + $0x38] sm:$0xf]
    %v117 = vld [vmem:[#allocation5 + $0x3c] sm:$0xf]
    %v118 = vld [vmem:[#allocation5 + $0x40] sm:$0xf]
    %v119 = vld [vmem:[#allocation5 + $0x44] sm:$0xf]
    %v120 = vld [vmem:[#allocation5 + $0x48] sm:$0xf]
    %v121 = vld [vmem:[#allocation5 + $0x4c] sm:$0xf]
    %v122 = vld [vmem:[#allocation5 + $0x50] sm:$0xf]
    %v123 = vld [vmem:[#allocation5 + $0x54] sm:$0xf]
    %v124 = vld [vmem:[#allocation5 + $0x58] sm:$0xf]
    %v125 = vld [vmem:[#allocation5 + $0x5c] sm:$0xf]
    %v126 = vld [vmem:[#allocation5 + $0x60] sm:$0xf]
    %v127 = vld [vmem:[#allocation5 + $0x64] sm:$0xf]
    %v128 = vld [vmem:[#allocation5 + $0x68] sm:$0xf]
    %v129 = vld [vmem:[%s2] sm:$0x1]
    %v131 = vlaneseq
    %v132 = vshrl.u32 %v131, 7
    %v133 = vsub.s32 0, %v132
    %v134 = vrot.slane %v129, %v133
    %v163 = vunpack.c.l.b16 %v102
    %v164 = vunpack.c.l.b16 %v103
    %v165 = vunpack.c.l.b16 %v104
    %v166 = vunpack.c.l.b16 %v105
    %v167 = vunpack.c.l.b16 %v106
    %v168 = vunpack.c.l.b16 %v107
    %v169 = vunpack.c.l.b16 %v108
    %v170 = vunpack.c.l.b16 %v109
    %v171 = vunpack.c.l.b16 %v110
    %v172 = vunpack.c.l.b16 %v111
    %v173 = vunpack.c.l.b16 %v112
    %v174 = vunpack.c.l.b16 %v113
    %v175 = vunpack.c.l.b16 %v114
    %v176 = vunpack.c.l.b16 %v115
    %v177 = vunpack.c.l.b16 %v116
    %v178 = vunpack.c.l.b16 %v117
    %v179 = vunpack.c.l.b16 %v118
    %v180 = vunpack.c.l.b16 %v119
    %v181 = vunpack.c.l.b16 %v120
    %v182 = vunpack.c.l.b16 %v121
    %v183 = vunpack.c.l.b16 %v122
    %v184 = vunpack.c.l.b16 %v123
    %v185 = vunpack.c.l.b16 %v124
    %v186 = vunpack.c.l.b16 %v125
    %v187 = vunpack.c.l.b16 %v126
    %v188 = vunpack.c.l.b16 %v127
    %v189 = vunpack.c.l.b16 %v128
    %v190 = vpack.c.b16 %v164, %v163
    %v191 = vpack.c.b16 %v166, %v165
    %v192 = vpack.c.b16 %v168, %v167
    %v193 = vpack.c.b16 %v170, %v169
    %v194 = vpack.c.b16 %v172, %v171
    %v195 = vpack.c.b16 %v174, %v173
    %v196 = vpack.c.b16 %v176, %v175
    %v197 = vpack.c.b16 %v178, %v177
    %v198 = vpack.c.b16 %v180, %v179
    %v199 = vpack.c.b16 %v182, %v181
    %v200 = vpack.c.b16 %v184, %v183
    %v201 = vpack.c.b16 %v186, %v185
    %v202 = vpack.c.b16 %v188, %v187
    %v203 = vpack.c.b16 %v189, %v189
    %vm217 = vcmask 719872
    %v219 = vsel %vm217, %v99, 0
    %v222 = vsel %vm217, %v101, 0
    %vm224 = vcmask 1043456
    %v226 = vsel %vm224, %v203, 0
    %228 = vmatprep.subr.bf16.mxu0 0
    %229 = vmatpush1.bf16.msra.mxu0 %v190
    %230 = vmatprep.subr.bf16.mxu0 0
    %231 = vmatpush1.bf16.msra.mxu0 %v191
    %232 = vmatprep.subr.bf16.mxu0 0
    %233 = vmatpush1.bf16.msra.mxu0 %v192
    %234 = vmatprep.subr.bf16.mxu0 0
    %235 = vmatpush1.bf16.msra.mxu0 %v193
    %236 = vmatprep.subr.bf16.mxu0 0
    %237 = vmatpush1.bf16.msra.mxu0 %v194
    %238 = vmatprep.subr.bf16.mxu0 0
    %239 = vmatpush1.bf16.msra.mxu0 %v195
    %240 = vmatprep.subr.bf16.mxu0 0
    %241 = vmatpush1.bf16.msra.mxu0 %v196
    %242 = vmatprep.subr.bf16.mxu0 0
    %243 = vmatpush1.bf16.msra.mxu0 %v197
    %244 = vmatprep.subr.bf16.mxu0 0
    %245 = vmatpush1.bf16.msra.mxu0 %v198
    %246 = vmatprep.subr.bf16.mxu0 0
    %247 = vmatpush1.bf16.msra.mxu0 %v199
    %248 = vmatprep.subr.bf16.mxu0 0
    %249 = vmatpush1.bf16.msra.mxu0 %v200
    %250 = vmatprep.subr.bf16.mxu0 0
    %251 = vmatpush1.bf16.msra.mxu0 %v201
    %252 = vmatprep.subr.bf16.mxu0 0
    %253 = vmatpush1.bf16.msra.mxu0 %v202
    %254 = vmatprep.subr.bf16.mxu0 0
    %255 = vmatpush1.bf16.msra.mxu0 %v226
    %256 = vmatprep.subr.bf16.mxu0 0
    %257 = vmatpush1.bf16.msra.mxu0 0
    %258 = vmatprep.subr.bf16.mxu0 0
    %259 = vmatpush1.bf16.msra.mxu0 0
    %260 = vmatprep.mubr.bf16.mxu0 %v219
    %261 = vmatmul.mubr.bf16.gmra.mrb[0].mxu0 %v98
    %v262 = vpop.f32.mrb[0].mxu0
    %v263 = vadd.f32 %v134, %v262
    %v264 = vpop.f32.mrb[0].mxu0
    %v265 = vpop.f32.mrb[0].mxu0
    %v266 = vadd.f32 %v134, %v265
    %v267 = vpop.f32.mrb[0].mxu0
    %268 = vmatprep.mubr.bf16.mxu0 %v222
    %269 = vmatmul.mubr.bf16.gmra.mrb[0].mxu0 %v100
    %v270 = vpop.f32.mrb[0].mxu0
    %v271 = vadd.f32 %v134, %v270
    %v272 = vpop.f32.mrb[0].mxu0
    %v273 = vpop.f32.mrb[0].mxu0
    %v274 = vadd.f32 %v134, %v273
    %v275 = vpop.f32.mrb[0].mxu0
    %276 = vdwg.mxu0
    %v277 = vmax.f32 %v263, 0.0
    %v278 = vmax.f32 %v266, 0.0
    %v279 = vmax.f32 %v271, 0.0
    %v280 = vmax.f32 %v274, 0.0
    %281 = vst [vmem:[#allocation7] sm:$0xff] %v277
    %282 = vst [vmem:[#allocation7 + $0x8] sm:$0xff] %v278
    %283 = vst [vmem:[#allocation7 + $0x10] sm:$0xff] %v279
    %284 = vst [vmem:[#allocation7 + $0x18] sm:$0xff] %v280
    // Predicated region
    $region22: #{tpu_custom_call.1} parent=1 // pred_check
      _
    $region23: #{tpu_custom_call.1} parent=1 // pred_check_branch
      %286 = sbr.rel (0) target = $region25
    $region24: #{tpu_custom_call.1} parent=1 // pred_region
      %s288 = ssub.s32 512, 512
      %289 = vsyncadd [#allocation4], %s288
      %s290 = sshll.u32 [#allocation7], 4
      %s291 = int_to_ptr.vmem [resolvable:$true] %s290
      %296 = dma.vmem_to_hbm [thread:$0]  %s291, 512, %s3, [#allocation4], 128, 128, 8
    $region25: #{tpu_custom_call.1} parent=1 // pred_fallthru
      _
    // Predicated region
    $region26: #{tpu_custom_call.1} parent=1 // pred_check
      _
    $region27: #{tpu_custom_call.1} parent=1 // pred_check_branch
      %298 = sbr.rel (0) target = $region29
    $region28: #{tpu_custom_call.1} parent=1 // pred_region
      %299 = dma.done [#allocation4], 512
    $region29: #{tpu_custom_call.1} parent=1 // pred_fallthru
      _
    %300 = vsyncpa [#allocation3], 1
    %301 = vsyncpa [#allocation6], 1
    %302 = vsyncpa [#allocation4], 1

</llo_original>
